<compile_context>
chip_gen: v5e
topology: v5e:2x2
jax: 0.10.0
libtpu: 0.0.40
codegen_flags: <defaults>
</compile_context>

<pallas_src>
import functools

import jax
import jax.numpy as jnp
from jax.experimental import pallas as pl
from jax.experimental.pallas import tpu as pltpu


def _round_up(x, m):
    return (x + m - 1) // m * m


def _tm_vmem_cap(K, D, out_itemsize, vmem_budget=24 * 1024 * 1024):
    """Largest tm (multiple of 8) whose pipelined working set fits the budget."""
    per_row = 2 * (K * 2) + 2 * (D * out_itemsize)   # double-buffered in + out
    fixed = 2 * (K * D * 2 + 3 * D * 4)              # resident weight + params (<=2 bufs)
    cap = (vmem_budget - fixed) // per_row
    return max(64, (cap // 8) * 8)


def _choose_tm(M, tm_cap):
    """Prefer a multiple-of-8 tile that divides M exactly (no padding, no
    output slice) and gives >= 2 grid steps (v7x megacore)."""
    cap = max(8, (min(tm_cap, _round_up(M, 8)) // 8) * 8)
    divisors = [d for d in range(8, min(cap, M) + 1, 8) if M % d == 0]
    if divisors:
        two_step = [d for d in divisors if M // d >= 2]
        return max(two_step) if two_step else max(divisors)
    # No clean divisor: fall back to a padded ragged last tile.
    tm = min(cap, _round_up(M, 8))
    if _round_up(M, tm) // tm < 2 and M > 16:
        tm = max(8, _round_up((M + 1) // 2, 8))      # keep >= 2 steps for megacore
    return tm


def _patch_embed_kernel(p_ref, w_ref, params_ref, o_ref, *, eps, use_norm):
    # p_ref:      (tm, K) bf16 patch rows (K = C*p*p, unpadded)
    # w_ref:      (K, D)  bf16 projection weight (resident)
    # params_ref: (3, D)  f32 rows = [bias, gamma, beta] (resident)
    # o_ref:      (tm, D) output block (D unpadded; full-dim last block dim)
    acc = jnp.dot(p_ref[...], w_ref[...], preferred_element_type=jnp.float32)
    acc = acc + params_ref[0:1, :]
    if use_norm:
        d = o_ref.shape[-1]
        mean = jnp.sum(acc, axis=-1, keepdims=True) * (1.0 / d)
        centered = acc - mean
        var = jnp.sum(centered * centered, axis=-1, keepdims=True) * (1.0 / d)
        acc = centered * jax.lax.rsqrt(var + eps)
        acc = acc * params_ref[1:2, :] + params_ref[2:3, :]
    o_ref[...] = acc.astype(o_ref.dtype)


def patch_embed(x, weight, bias, gamma=None, beta=None, patch_size=4, *,
                eps=1e-5, tm_max=2048, out_dtype=jnp.float32):
    """Swin PatchEmbed forward.

    x: (B, C, H, W).  weight: (embed_dim, C, p, p) (nn.Conv2d OIHW).  bias:
    (embed_dim,).  gamma/beta: LayerNorm affine params (gamma=None => no norm,
    matching norm_layer=None).  Returns (B, (H//p)*(W//p), embed_dim) in
    out_dtype (pass jnp.bfloat16 if the downstream blocks consume bf16).
    """
    B, C, H, W = x.shape
    p = patch_size
    D = weight.shape[0]
    Hp, Wp = H // p, W // p
    N = Hp * Wp
    K = C * p * p
    M = B * N
    use_norm = gamma is not None

    # --- wrapper glue (plain JAX) ------------------------------------------
    # Patchify in bf16: (B,C,H,W) -> (B*N, C*p*p), columns in [C, ph, pw] order
    # to match the Conv2d weight layout.  See TODO(synk) at top about fusing.
    xp = x.astype(jnp.bfloat16).reshape(B, C, Hp, p, Wp, p)
    xp = jnp.transpose(xp, (0, 2, 4, 1, 3, 5))           # (B, Hp, Wp, C, p, p)
    patches = xp.reshape(M, K)

    # Conv weight -> (K, D) matmul weight, bf16, NOT padded.
    w_mat = weight.reshape(D, K).T.astype(jnp.bfloat16)
    if gamma is None:
        gamma = jnp.ones((D,), jnp.float32)
        beta = jnp.zeros((D,), jnp.float32)
    params = jnp.stack([bias.astype(jnp.float32),
                        gamma.astype(jnp.float32),
                        beta.astype(jnp.float32)], axis=0)   # (3, D)

    out_itemsize = jnp.dtype(out_dtype).itemsize
    tm = _choose_tm(M, min(tm_max, _tm_vmem_cap(K, D, out_itemsize)))
    M_pad = _round_up(M, tm)
    if M_pad != M:
        # Ragged last tile: zero rows go through LayerNorm (rsqrt(eps) only —
        # no NaN/Inf) and are sliced off below.  Keep the slice if editing.
        patches = jnp.pad(patches, ((0, M_pad - M), (0, 0)))

    kernel = functools.partial(_patch_embed_kernel, eps=eps, use_norm=use_norm)

    def run(single_buffer_resident):
        resident_kwargs = (
            dict(pipeline_mode=pl.Buffered(1)) if single_buffer_resident else {})
        return pl.pallas_call(
            kernel,
            out_shape=jax.ShapeDtypeStruct((M_pad, D), out_dtype),
            grid_spec=pltpu.PrefetchScalarGridSpec(
                num_scalar_prefetch=0,
                grid=(M_pad // tm,),
                in_specs=[
                    pl.BlockSpec((tm, K), lambda i: (i, 0)),
                    pl.BlockSpec((K, D), lambda i: (0, 0), **resident_kwargs),
                    pl.BlockSpec((3, D), lambda i: (0, 0), **resident_kwargs),
                ],
                out_specs=pl.BlockSpec((tm, D), lambda i: (i, 0)),
            ),
            compiler_params=pltpu.CompilerParams(
                dimension_semantics=("parallel",),
                vmem_limit_bytes=32 * 1024 * 1024),
        )(patches, w_mat, params)

    try:
        out = run(True)           # single-buffered resident weight/params
    except Exception:             # Buffered(1) unsupported -> default buffering
        out = run(False)

    if M_pad != M:
        out = out[:M]
    return out.reshape(B, N, D)


if __name__ == "__main__":
    # Small config consistent with the module: img_size=16, patch_size=4,
    # in_chans=4, embed_dim=32, batch=2  -> num_patches = 16.
    B, C, H, W = 2, 4, 16, 16
    patch_size = 4
    embed_dim = 32

    key = jax.random.PRNGKey(0)
    kx, kw, kb = jax.random.split(key, 3)

    x = jax.random.normal(kx, (B, C, H, W), dtype=jnp.float32)
    weight = 0.02 * jax.random.normal(
        kw, (embed_dim, C, patch_size, patch_size), dtype=jnp.float32)
    bias = 0.01 * jax.random.normal(kb, (embed_dim,), dtype=jnp.float32)
    gamma = jnp.ones((embed_dim,), dtype=jnp.float32)   # nn.LayerNorm default init
    beta = jnp.zeros((embed_dim,), dtype=jnp.float32)

    out = jax.block_until_ready(
        patch_embed(x, weight, bias, gamma, beta, patch_size))

    # Reference: strided conv == patch matmul, then LayerNorm.  Use the same
    # bf16-rounded x / weight the kernel consumes so only accumulation order
    # differs.  (Production numerics: bf16 matmul inputs, f32 accumulation.)
    x_r = x.astype(jnp.bfloat16).astype(jnp.float32)
    w_r = weight.astype(jnp.bfloat16).astype(jnp.float32)
    ref = jax.lax.conv_general_dilated(
        x_r, w_r, window_strides=(patch_size, patch_size), padding="VALID",
        dimension_numbers=("NCHW", "OIHW", "NCHW")) + bias[None, :, None, None]
    ref = ref.reshape(B, embed_dim, -1).transpose(0, 2, 1)
    mean = ref.mean(-1, keepdims=True)
    var = ((ref - mean) ** 2).mean(-1, keepdims=True)
    ref = (ref - mean) / jnp.sqrt(var + 1e-5) * gamma + beta

    assert out.shape == (B, (H // patch_size) * (W // patch_size), embed_dim)
    assert out.dtype == jnp.float32
    assert jnp.allclose(out, ref, atol=2e-3, rtol=2e-3), \
        float(jnp.abs(out - ref).max())

    print("KERNEL_OK")
</pallas_src>

<mosaic_0001>
module attributes {stable_mosaic.version = 11 : i64} {
  func.func @_patch_embed_kernel(%arg0: i32, %arg1: memref<16x64xbf16, #tpu.memory_space<vmem>>, %arg2: memref<64x32xbf16, #tpu.memory_space<vmem>>, %arg3: memref<3x32xf32, #tpu.memory_space<vmem>>, %arg4: memref<16x32xf32, #tpu.memory_space<vmem>>) attributes {dimension_semantics = [#tpu.dimension_semantics<parallel>], iteration_bounds = array<i64: 2>, scalar_prefetch = 0 : i64, scratch_operands = 0 : i64, tpu.core_type = #tpu.core_type<tc>, window_params = [{transform_indices = @transform_0, window_bounds = array<i64: 16, 64>}, {pipeline_mode = #tpu.pipeline_mode<synchronous>, transform_indices = @transform_1, window_bounds = array<i64: 64, 32>}, {pipeline_mode = #tpu.pipeline_mode<synchronous>, transform_indices = @transform_2, window_bounds = array<i64: 3, 32>}, {transform_indices = @transform_3, window_bounds = array<i64: 16, 32>}]} {
    %c0 = arith.constant 0 : index
    %c0_0 = arith.constant 0 : index
    %0 = vector.load %arg1[%c0, %c0_0] : memref<16x64xbf16, #tpu.memory_space<vmem>>, vector<16x64xbf16>
    %c0_1 = arith.constant 0 : index
    %c0_2 = arith.constant 0 : index
    %1 = vector.load %arg2[%c0_1, %c0_2] : memref<64x32xbf16, #tpu.memory_space<vmem>>, vector<64x32xbf16>
    %cst = arith.constant dense<0.000000e+00> : vector<16x32xf32>
    %2 = tpu.matmul %0, %1, %cst {dimension_numbers = #tpu.dot_dimension_numbers<[1], [0], [0], [1], [0, 0, 1, 1], [], []>} : vector<16x64xbf16>, vector<64x32xbf16>, vector<16x32xf32> -> vector<16x32xf32>
    %c0_3 = arith.constant 0 : index
    %c0_4 = arith.constant 0 : index
    %3 = vector.load %arg3[%c0_3, %c0_4] : memref<3x32xf32, #tpu.memory_space<vmem>>, vector<1x32xf32>
    %4 = vector.broadcast %3 : vector<1x32xf32> to vector<16x32xf32>
    %5 = arith.addf %2, %4 : vector<16x32xf32>
    %cst_5 = arith.constant dense<0.000000e+00> : vector<16xf32>
    %6 = vector.multi_reduction <add>, %5, %cst_5 [1] : vector<16x32xf32> to vector<16xf32>
    %7 = vector.shape_cast %6 : vector<16xf32> to vector<16x1xf32>
    %cst_6 = arith.constant 3.125000e-02 : f32
    %8 = vector.broadcast %cst_6 : f32 to vector<16x1xf32>
    %9 = arith.mulf %7, %8 : vector<16x1xf32>
    %10 = vector.broadcast %9 : vector<16x1xf32> to vector<16x32xf32>
    %11 = arith.subf %5, %10 : vector<16x32xf32>
    %12 = arith.mulf %11, %11 : vector<16x32xf32>
    %cst_7 = arith.constant dense<0.000000e+00> : vector<16xf32>
    %13 = vector.multi_reduction <add>, %12, %cst_7 [1] : vector<16x32xf32> to vector<16xf32>
    %14 = vector.shape_cast %13 : vector<16xf32> to vector<16x1xf32>
    %cst_8 = arith.constant 3.125000e-02 : f32
    %15 = vector.broadcast %cst_8 : f32 to vector<16x1xf32>
    %16 = arith.mulf %14, %15 : vector<16x1xf32>
    %cst_9 = arith.constant 9.99999974E-6 : f32
    %17 = vector.broadcast %cst_9 : f32 to vector<16x1xf32>
    %18 = arith.addf %16, %17 : vector<16x1xf32>
    %19 = math.rsqrt %18 : vector<16x1xf32>
    %20 = vector.broadcast %19 : vector<16x1xf32> to vector<16x32xf32>
    %21 = arith.mulf %11, %20 : vector<16x32xf32>
    %c1 = arith.constant 1 : index
    %c0_10 = arith.constant 0 : index
    %22 = vector.load %arg3[%c1, %c0_10] : memref<3x32xf32, #tpu.memory_space<vmem>>, vector<1x32xf32>
    %23 = vector.broadcast %22 : vector<1x32xf32> to vector<16x32xf32>
    %24 = arith.mulf %21, %23 : vector<16x32xf32>
    %c2 = arith.constant 2 : index
    %c0_11 = arith.constant 0 : index
    %25 = vector.load %arg3[%c2, %c0_11] : memref<3x32xf32, #tpu.memory_space<vmem>>, vector<1x32xf32>
    %26 = vector.broadcast %25 : vector<1x32xf32> to vector<16x32xf32>
    %27 = arith.addf %24, %26 : vector<16x32xf32>
    %c0_12 = arith.constant 0 : index
    %c0_13 = arith.constant 0 : index
    %28 = vector.load %arg4[%c0_12, %c0_13] : memref<16x32xf32, #tpu.memory_space<vmem>>, vector<16x32xf32>
    tpu.vector_store %arg4[%c0_12, %c0_13], %27 {strides = array<i32>} : memref<16x32xf32, #tpu.memory_space<vmem>>, vector<16x32xf32>,
    return
  }
  func.func @transform_0(%arg0: i32) -> (i32, i32) {
    %c0_i32 = arith.constant 0 : i32
    %c0_i32_0 = arith.constant 0 : i32
    return %arg0, %c0_i32 : i32, i32
  }
  func.func @transform_1(%arg0: i32) -> (i32, i32) {
    %c0_i32 = arith.constant 0 : i32
    %c0_i32_0 = arith.constant 0 : i32
    %c0_i32_1 = arith.constant 0 : i32
    return %c0_i32, %c0_i32_0 : i32, i32
  }
  func.func @transform_2(%arg0: i32) -> (i32, i32) {
    %c0_i32 = arith.constant 0 : i32
    %c0_i32_0 = arith.constant 0 : i32
    %c0_i32_1 = arith.constant 0 : i32
    return %c0_i32, %c0_i32_0 : i32, i32
  }
  func.func @transform_3(%arg0: i32) -> (i32, i32) {
    %c0_i32 = arith.constant 0 : i32
    %c0_i32_0 = arith.constant 0 : i32
    return %arg0, %c0_i32 : i32, i32
  }
}

module attributes {stable_mosaic.version = 11 : i64} {
  func.func @_patch_embed_kernel(%arg0: i32, %arg1: memref<16x64xbf16, #tpu.memory_space<vmem>>, %arg2: memref<64x32xbf16, #tpu.memory_space<vmem>>, %arg3: memref<3x32xf32, #tpu.memory_space<vmem>>, %arg4: memref<16x32xf32, #tpu.memory_space<vmem>>) attributes {dimension_semantics = [#tpu.dimension_semantics<parallel>], iteration_bounds = array<i64: 2>, scalar_prefetch = 0 : i64, scratch_operands = 0 : i64, tpu.core_type = #tpu.core_type<tc>, window_params = [{transform_indices = @transform_0, window_bounds = array<i64: 16, 64>}, {pipeline_mode = #tpu.pipeline_mode<synchronous>, transform_indices = @transform_1, window_bounds = array<i64: 64, 32>}, {pipeline_mode = #tpu.pipeline_mode<synchronous>, transform_indices = @transform_2, window_bounds = array<i64: 3, 32>}, {transform_indices = @transform_3, window_bounds = array<i64: 16, 32>}]} {
    %c0 = arith.constant 0 : index
    %c0_0 = arith.constant 0 : index
    %0 = vector.load %arg1[%c0, %c0_0] : memref<16x64xbf16, #tpu.memory_space<vmem>>, vector<16x64xbf16>
    %c0_1 = arith.constant 0 : index
    %c0_2 = arith.constant 0 : index
    %1 = vector.load %arg2[%c0_1, %c0_2] : memref<64x32xbf16, #tpu.memory_space<vmem>>, vector<64x32xbf16>
    %cst = arith.constant dense<0.000000e+00> : vector<16x32xf32>
    %2 = tpu.matmul %0, %1, %cst {dimension_numbers = #tpu.dot_dimension_numbers<[1], [0], [0], [1], [0, 0, 1, 1], [], []>} : vector<16x64xbf16>, vector<64x32xbf16>, vector<16x32xf32> -> vector<16x32xf32>
    %c0_3 = arith.constant 0 : index
    %c0_4 = arith.constant 0 : index
    %3 = vector.load %arg3[%c0_3, %c0_4] : memref<3x32xf32, #tpu.memory_space<vmem>>, vector<1x32xf32>
    %4 = vector.broadcast %3 : vector<1x32xf32> to vector<16x32xf32>
    %5 = arith.addf %2, %4 : vector<16x32xf32>
    %cst_5 = arith.constant dense<0.000000e+00> : vector<16xf32>
    %6 = vector.multi_reduction <add>, %5, %cst_5 [1] : vector<16x32xf32> to vector<16xf32>
    %7 = vector.shape_cast %6 : vector<16xf32> to vector<16x1xf32>
    %cst_6 = arith.constant 3.125000e-02 : f32
    %8 = vector.broadcast %cst_6 : f32 to vector<16x1xf32>
    %9 = arith.mulf %7, %8 : vector<16x1xf32>
    %10 = vector.broadcast %9 : vector<16x1xf32> to vector<16x32xf32>
    %11 = arith.subf %5, %10 : vector<16x32xf32>
    %12 = arith.mulf %11, %11 : vector<16x32xf32>
    %cst_7 = arith.constant dense<0.000000e+00> : vector<16xf32>
    %13 = vector.multi_reduction <add>, %12, %cst_7 [1] : vector<16x32xf32> to vector<16xf32>
    %14 = vector.shape_cast %13 : vector<16xf32> to vector<16x1xf32>
    %cst_8 = arith.constant 3.125000e-02 : f32
    %15 = vector.broadcast %cst_8 : f32 to vector<16x1xf32>
    %16 = arith.mulf %14, %15 : vector<16x1xf32>
    %cst_9 = arith.constant 9.99999974E-6 : f32
    %17 = vector.broadcast %cst_9 : f32 to vector<16x1xf32>
    %18 = arith.addf %16, %17 : vector<16x1xf32>
    %19 = math.rsqrt %18 : vector<16x1xf32>
    %20 = vector.broadcast %19 : vector<16x1xf32> to vector<16x32xf32>
    %21 = arith.mulf %11, %20 : vector<16x32xf32>
    %c1 = arith.constant 1 : index
    %c0_10 = arith.constant 0 : index
    %22 = vector.load %arg3[%c1, %c0_10] : memref<3x32xf32, #tpu.memory_space<vmem>>, vector<1x32xf32>
    %23 = vector.broadcast %22 : vector<1x32xf32> to vector<16x32xf32>
    %24 = arith.mulf %21, %23 : vector<16x32xf32>
    %c2 = arith.constant 2 : index
    %c0_11 = arith.constant 0 : index
    %25 = vector.load %arg3[%c2, %c0_11] : memref<3x32xf32, #tpu.memory_space<vmem>>, vector<1x32xf32>
    %26 = vector.broadcast %25 : vector<1x32xf32> to vector<16x32xf32>
    %27 = arith.addf %24, %26 : vector<16x32xf32>
    %c0_12 = arith.constant 0 : index
    %c0_13 = arith.constant 0 : index
    %28 = vector.load %arg4[%c0_12, %c0_13] : memref<16x32xf32, #tpu.memory_space<vmem>>, vector<16x32xf32>
    tpu.vector_store %arg4[%c0_12, %c0_13], %27 {strides = array<i32>} : memref<16x32xf32, #tpu.memory_space<vmem>>, vector<16x32xf32>,
    return
  }
  func.func @transform_0(%arg0: i32) -> (i32, i32) {
    %c0_i32 = arith.constant 0 : i32
    %c0_i32_0 = arith.constant 0 : i32
    return %arg0, %c0_i32 : i32, i32
  }
  func.func @transform_1(%arg0: i32) -> (i32, i32) {
    %c0_i32 = arith.constant 0 : i32
    %c0_i32_0 = arith.constant 0 : i32
    %c0_i32_1 = arith.constant 0 : i32
    return %c0_i32, %c0_i32_0 : i32, i32
  }
  func.func @transform_2(%arg0: i32) -> (i32, i32) {
    %c0_i32 = arith.constant 0 : i32
    %c0_i32_0 = arith.constant 0 : i32
    %c0_i32_1 = arith.constant 0 : i32
    return %c0_i32, %c0_i32_0 : i32, i32
  }
  func.func @transform_3(%arg0: i32) -> (i32, i32) {
    %c0_i32 = arith.constant 0 : i32
    %c0_i32_0 = arith.constant 0 : i32
    return %arg0, %c0_i32 : i32, i32
  }
}

</mosaic_0001>

<llo_original>
// kernel: tpu_custom_call.1
$region0: #{tpu_custom_call.1}
  #allocation0 [shape = 'u32[]', space=smem, size = 0x4, offset = 0x4, fixed_abs, tag = 'smem constant byte address 0x4 - core index']
  #allocation1 [shape = 'u32[72,128]{1,0:T(1,128)}', space=vmem, size = 0x9000, scoped, tag = 'internal scratch']
  %s0 = inlined_call_operand.vmem [shape: bf16[32,64], index: 0, kind: input, shape index: {}]
  %s1 = inlined_call_operand.vmem [shape: bf16[64,32], index: 1, kind: input, shape index: {}]
  %s2 = inlined_call_operand.vmem [shape: f32[3,32], index: 2, kind: input, shape index: {}]
  %s3 = inlined_call_operand.hbm [shape: f32[32,32], index: 3, kind: output, shape index: {}]
  %s4 = sld [smem:[#allocation0]]
  $region45: #{tpu_custom_call.1} parent=0
    _
  %s6 = ssub.s32 1, %s4
  %s7 = scalar_select 0, %s6, %s4
  $region1: #{tpu_custom_call.1} parent=0
    #allocation2 [shape = 'u8[16384]{0}', space=vmem, size = 0x4000, scoped, tag = 'output window, operand 0']
    #allocation3 [shape = 's32[2]{0}', space=sflag, size = 0x8, scoped, tag = 'scoped memory for tpu_custom_call.1']
    %8 = vsyncpa [#allocation3], 0
    %s9 = scalar_lea.sflag [#allocation3], 1
    %10 = vsyncpa %s9, 0
    loop: start=0, step=1, limit=4
    $region2: #{tpu_custom_call.1} parent=1 // loop_pre_header
      _
    $region3: #{tpu_custom_call.1} parent=1 // loop_header
      %s12 = sphi 0, %s16
      %p13 = scmp.ge.s32.totalorder %s12, 4
      %s22 = sphi 0, %s24
      %s25 = sphi 0, %s22
      %s26 = sphi 0, %s25
      %s42 = sphi 0, %s26
      %s46 = sphi 0, %s46
      %s48 = sphi 0, %s46
      %s49 = sphi 0, %s48
      %s63 = sphi 0, %s49
      %s67 = sphi 0, %s67
      %s69 = sphi 0, %s67
      %s70 = sphi 0, %s69
      %s84 = sphi 0, %s70
      %s90 = sphi 0, %s92
      %s93 = sphi 0, %s90
      %s94 = sphi 0, %s93
      %s110 = sphi 0, %s94
    $region4: #{tpu_custom_call.1} parent=1 // loop_header_branch
      %15 = sbr.rel (%p13) target = $region8
    $region5: #{tpu_custom_call.1} parent=1 // loop_body
      %s17 = ssub.s32 %s12, 1
      %s18 = ssub.s32 %s12, 2
      %s19 = sadd.s32 %s12, 1
      %s20 = ssub.s32 %s12, %s19
      %p21 = scmp.eq.s32.totalorder %s20, 0
      %s23 = sadd.s32 %s22, 1
      %s24 = scalar_select %p21, %s22, %s23
      %p27 = pneg %p21
      %p28 = scmp.eq.s32.totalorder %s12, 1
      %p29 = por %p27, %p28
      %p30 = scmp.ne.s32.totalorder %s22, %s25
      %p31 = scmp.eq.s32.totalorder %s12, 0
      %p32 = por %p30, %p31
      %p33 = scmp.ne.s32.totalorder %s22, %s25
      %p34 = scmp.eq.s32.totalorder %s17, 1
      %p35 = por %p33, %p34
      %p36 = scmp.ne.s32.totalorder %s25, %s26
      %p37 = scmp.eq.s32.totalorder %s17, 0
      %p38 = por %p36, %p37
      %p39 = scmp.ne.s32.totalorder %s25, %s26
      %p40 = scmp.eq.s32.totalorder %s18, 1
      %p41 = por %p39, %p40
      %p43 = scmp.ne.s32.totalorder %s26, %s42
      %p44 = scmp.eq.s32.totalorder %s18, 0
      %p45 = por %p43, %p44
      %s47 = sadd.s32 %s46, 1
      %p50 = scmp.eq.s32.totalorder %s12, 1
      %p51 = scmp.ne.s32.totalorder %s46, %s48
      %p52 = scmp.eq.s32.totalorder %s12, 0
      %p53 = por %p51, %p52
      %p54 = scmp.ne.s32.totalorder %s46, %s48
      %p55 = scmp.eq.s32.totalorder %s17, 1
      %p56 = por %p54, %p55
      %p57 = scmp.ne.s32.totalorder %s48, %s49
      %p58 = scmp.eq.s32.totalorder %s17, 0
      %p59 = por %p57, %p58
      %p60 = scmp.ne.s32.totalorder %s48, %s49
      %p61 = scmp.eq.s32.totalorder %s18, 1
      %p62 = por %p60, %p61
      %p64 = scmp.ne.s32.totalorder %s49, %s63
      %p65 = scmp.eq.s32.totalorder %s18, 0
      %p66 = por %p64, %p65
      %s68 = sadd.s32 %s67, 1
      %p71 = scmp.eq.s32.totalorder %s12, 1
      %p72 = scmp.ne.s32.totalorder %s67, %s69
      %p73 = scmp.eq.s32.totalorder %s12, 0
      %p74 = por %p72, %p73
      %p75 = scmp.ne.s32.totalorder %s67, %s69
      %p76 = scmp.eq.s32.totalorder %s17, 1
      %p77 = por %p75, %p76
      %p78 = scmp.ne.s32.totalorder %s69, %s70
      %p79 = scmp.eq.s32.totalorder %s17, 0
      %p80 = por %p78, %p79
      %p81 = scmp.ne.s32.totalorder %s69, %s70
      %p82 = scmp.eq.s32.totalorder %s18, 1
      %p83 = por %p81, %p82
      %p85 = scmp.ne.s32.totalorder %s70, %s84
      %p86 = scmp.eq.s32.totalorder %s18, 0
      %p87 = por %p85, %p86
      %s88 = ssub.s32 %s12, %s19
      %p89 = scmp.eq.s32.totalorder %s88, 0
      %s91 = sadd.s32 %s90, 1
      %s92 = scalar_select %p89, %s90, %s91
      %p95 = pneg %p89
      %p96 = scmp.eq.s32.totalorder %s12, 1
      %p97 = por %p95, %p96
      %p98 = scmp.ne.s32.totalorder %s90, %s93
      %p99 = scmp.eq.s32.totalorder %s12, 0
      %p100 = por %p98, %p99
      %p101 = scmp.ne.s32.totalorder %s90, %s93
      %p102 = scmp.eq.s32.totalorder %s17, 1
      %p103 = por %p101, %p102
      %p104 = scmp.ne.s32.totalorder %s93, %s94
      %p105 = scmp.eq.s32.totalorder %s17, 0
      %p106 = por %p104, %p105
      %p107 = scmp.ne.s32.totalorder %s93, %s94
      %p108 = scmp.eq.s32.totalorder %s18, 1
      %p109 = por %p107, %p108
      %p111 = scmp.ne.s32.totalorder %s94, %s110
      %p112 = scmp.eq.s32.totalorder %s18, 0
      %p113 = por %p111, %p112
      %p114 = scmp.le.s32.totalorder 1, %s12
      %p115 = scmp.lt.s32.totalorder %s12, 3
      %p116 = pnand %p114, %p115
      %p117 = pneg %p116
      // Predicated region
      $region9: #{tpu_custom_call.1} parent=5 // pred_check
        _
      $region10: #{tpu_custom_call.1} parent=5 // pred_check_branch
        %119 = sbr.rel (%p116) target = $region12
      $region11: #{tpu_custom_call.1} parent=5 // pred_region
        %s120 = ssub.s32 %s12, 1
        // Predicated region
        $region13: #{tpu_custom_call.1} parent=11 // pred_check
          %p121 = pneg %p59
        $region14: #{tpu_custom_call.1} parent=11 // pred_check_branch
          %123 = sbr.rel (%p121) target = $region16
        $region15: #{tpu_custom_call.1} parent=11 // pred_region
          _
        $region16: #{tpu_custom_call.1} parent=11 // pred_fallthru
          _
        // Predicated region
        $region17: #{tpu_custom_call.1} parent=11 // pred_check
          %p124 = pneg %p80
        $region18: #{tpu_custom_call.1} parent=11 // pred_check_branch
          %126 = sbr.rel (%p124) target = $region20
        $region19: #{tpu_custom_call.1} parent=11 // pred_region
          _
        $region20: #{tpu_custom_call.1} parent=11 // pred_fallthru
          _
      $region12: #{tpu_custom_call.1} parent=5 // pred_fallthru
        _
      %p127 = scmp.lt.s32.totalorder %s12, 2
      // Predicated region
      $region21: #{tpu_custom_call.1} parent=5 // pred_check
        %p128 = pneg %p127
      $region22: #{tpu_custom_call.1} parent=5 // pred_check_branch
        %130 = sbr.rel (%p128) target = $region24
      $region23: #{tpu_custom_call.1} parent=5 // pred_region
        // Predicated region
        $region25: #{tpu_custom_call.1} parent=23 // pred_check
          %p131 = pneg %p32
        $region26: #{tpu_custom_call.1} parent=23 // pred_check_branch
          %133 = sbr.rel (%p131) target = $region28
        $region27: #{tpu_custom_call.1} parent=23 // pred_region
          %s134 = smul.u32 2, %s12
          %p135 = scmp.lt.s32.totalorder %s134, 3
          %s136 = scalar_select %p135, %s134, 3
          %s137 = smul.addr %s136, 4
          %s138 = scalar_lea.vmem %s0, %s137
          %s139 = smul.u32 2, %s12
        $region28: #{tpu_custom_call.1} parent=23 // pred_fallthru
          _
      $region24: #{tpu_custom_call.1} parent=5 // pred_fallthru
        _
      %p140 = scmp.le.s32.totalorder 1, %s12
      %p141 = scmp.lt.s32.totalorder %s12, 3
      %p142 = pnand %p140, %p141
      %p143 = pneg %p142
      // Predicated region
      $region29: #{tpu_custom_call.1} parent=5 // pred_check
        _
      $region30: #{tpu_custom_call.1} parent=5 // pred_check_branch
        %145 = sbr.rel (%p142) target = $region32
      $region31: #{tpu_custom_call.1} parent=5 // pred_region
        %s146 = ssub.s32 %s12, 1
        %s147 = smul.u32 2, %s17
        %p148 = scmp.lt.s32.totalorder %s147, 3
        %s149 = scalar_select %p148, %s147, 3
        %s150 = smul.addr %s149, 4
        %s151 = scalar_lea.vmem %s0, %s150
        %p152 = pneg %p38
        %p153 = pneg %p35
        %p154 = pneg %p59
        %p155 = pneg %p56
        %p156 = pneg %p80
        %p157 = pneg %p77
        %p158 = pneg %p106
        %p159 = pneg %p103
        %s160 = sand.u32 %s93, 1
        %s161 = scalar_lea.sflag [#allocation3], %s160
        %s162 = sand.u32 %s93, 1
        %s163 = smul.addr %s162, 16
        %s164 = scalar_lea.vmem [#allocation2], %s163
        %s165 = smul.u32 2, %s17
        %p166 = scmp.lt.s32.totalorder %s165, 3
        %s167 = scalar_select %p166, %s165, 3
        %s168 = smul.addr %s167, 4
        %s169 = scalar_lea.vmem %s0, %s168
        %s170 = smul.u32 2, %s17
        %s171 = smul.u32 2, %s17
        %v173 = vld [vmem:[%s169] sm:$0xf]
        %v174 = vld [vmem:[%s169 + $0x4] sm:$0xf]
        %v175 = vld [vmem:[%s1] sm:$0xf]
        %v176 = vld [vmem:[%s1 + $0x4] sm:$0xf]
        %v177 = vld [vmem:[%s1 + $0x8] sm:$0xf]
        %v178 = vld [vmem:[%s1 + $0xc] sm:$0xf]
        %v179 = vld [vmem:[%s1 + $0x10] sm:$0xf]
        %v180 = vld [vmem:[%s1 + $0x14] sm:$0xf]
        %v181 = vld [vmem:[%s1 + $0x18] sm:$0xf]
        %v182 = vld [vmem:[%s1 + $0x1c] sm:$0xf]
        %v183 = vld [vmem:[%s2] sm:$0x1]
        %v184 = vperm.slane %v183, 0
        %v187 = vunpack.c.l.b16 %v173
        %v188 = vunpack.c.l.b16 %v174
        %v189 = vpack.c.b16 %v188, %v187
        %v198 = vunpack.c.l.b16 %v175
        %v199 = vunpack.c.l.b16 %v176
        %v200 = vunpack.c.l.b16 %v177
        %v201 = vunpack.c.l.b16 %v178
        %v202 = vunpack.c.l.b16 %v179
        %v203 = vunpack.c.l.b16 %v180
        %v204 = vunpack.c.l.b16 %v181
        %v205 = vunpack.c.l.b16 %v182
        %v206 = vpack.c.b16 %v199, %v198
        %v207 = vpack.c.b16 %v201, %v200
        %v208 = vpack.c.b16 %v203, %v202
        %v209 = vpack.c.b16 %v205, %v204
        %vm214 = vcmask 523264
        %v216 = vsel %vm214, %v189, 0
        %218 = vmatpush.bf16.msra.mxu0 0
        %219 = vmatpush.bf16.msra.mxu0 0
        %220 = vmatpush.bf16.msra.mxu0 0
        %221 = vmatpush.bf16.msra.mxu0 0
        %222 = vmatpush.bf16.msra.mxu0 %v209
        %223 = vmatpush.bf16.msra.mxu0 %v208
        %224 = vmatpush.bf16.msra.mxu0 %v207
        %225 = vmatpush.bf16.msra.mxu0 %v206
        %226 = vmatmul.bf16.gmra.mxu0 %v216
        %v227 = vpop.f32.mrf.mxu0
        %v228 = vadd.f32 %v184, %v227
        %v229 = vpop.f32.mrf.mxu0
        %v230 = vadd.f32 %v184, %v229
        %231 = vdwg.mxu0
        %vm232 = vcmask 261120
        %v233 = vsel %vm232, %v228, 0.0
        %234 = vadd.xlane.f32.xlu0 %v233
        %v235 = vpop.xlane.xlu0 %234
        %v236 = vsel %vm232, %v230, 0.0
        %237 = vadd.xlane.f32.xlu0 %v236
        %v238 = vpop.xlane.xlu0 %237
        %v239 = vmul.f32 %v235, 0.03125
        %v240 = vmul.f32 %v238, 0.03125
        %v241 = vsub.f32 %v228, %v239
        %v242 = vsub.f32 %v230, %v240
        %v243 = vmul.f32 %v241, %v241
        %v244 = vmul.f32 %v242, %v242
        %v245 = vsel %vm232, %v243, 0.0
        %246 = vadd.xlane.f32.xlu0 %v245
        %v247 = vpop.xlane.xlu0 %246
        %v248 = vsel %vm232, %v244, 0.0
        %249 = vadd.xlane.f32.xlu0 %v248
        %v250 = vpop.xlane.xlu0 %249
        %v251 = vmul.f32 %v247, 0.03125
        %v252 = vmul.f32 %v250, 0.03125
        %v253 = vadd.f32 %v251, 1e-05
        %v254 = vadd.f32 %v252, 1e-05
        %v255 = vrsqrt.pop %v253
        %v256 = vmul.f32 %v255, %v253
        %v257 = vmul.f32 %v256, %v255
        %v258 = vmul.f32 0.5, %v257
        %v259 = vsub.f32 1.5, %v258
        %v260 = vmul.f32 %v255, %v259
        %vm261 = vweird.f32 %v253
        %vm262 = vweird.f32 %v255
        %vm263 = vmor %vm261, %vm262
        %v264 = vsel %vm263, %v255, %v260
        %v265 = vrsqrt.pop %v254
        %v266 = vmul.f32 %v265, %v254
        %v267 = vmul.f32 %v266, %v265
        %v268 = vmul.f32 0.5, %v267
        %v269 = vsub.f32 1.5, %v268
        %v270 = vmul.f32 %v265, %v269
        %vm271 = vweird.f32 %v254
        %vm272 = vweird.f32 %v265
        %vm273 = vmor %vm271, %vm272
        %v274 = vsel %vm273, %v265, %v270
        %v275 = vmul.f32 %v241, %v264
        %v276 = vmul.f32 %v242, %v274
        %v277 = vld [vmem:[%s2 + $0x1] sm:$0x1]
        %v278 = vperm.slane %v277, 0
        %v279 = vmul.f32 %v275, %v278
        %v280 = vmul.f32 %v276, %v278
        %v281 = vld [vmem:[%s2 + $0x2] sm:$0x1]
        %v282 = vperm.slane %v281, 0
        %v283 = vadd.f32 %v279, %v282
        %v284 = vadd.f32 %v280, %v282
        %285 = vst.msk [vmem:[%s164] sm:$0xff] %vm232, %v283
        %286 = vst.msk [vmem:[%s164 + $0x8] sm:$0xff] %vm232, %v284
        %s287 = sand.u32 %s93, 1
        %s288 = scalar_lea.sflag [#allocation3], %s287
        %s289 = sand.u32 %s93, 1
        %s290 = smul.addr %s289, 16
        %s291 = scalar_lea.vmem [#allocation2], %s290
        // Predicated region
        $region33: #{tpu_custom_call.1} parent=31 // pred_check
          %p292 = pneg %p103
        $region34: #{tpu_custom_call.1} parent=31 // pred_check_branch
          %294 = sbr.rel (%p292) target = $region36
        $region35: #{tpu_custom_call.1} parent=31 // pred_region
          %s295 = smul.u32 2, %s17
          %297 = vsyncadd %s288, 0
          %s298 = smul.addr %s295, 8
          %s299 = scalar_lea.hbm %s3, %s298
          %s300 = sshll.u32 %s291, 4
          %s301 = int_to_ptr.vmem [resolvable:$true] %s300
          %s302 = sshll.u32 %s299, 4
          %s303 = int_to_ptr.hbm [resolvable:$true] %s302
          %308 = dma.vmem_to_hbm [thread:$0]  %s301, 256, %s303, %s288, 128, 128, 8
        $region36: #{tpu_custom_call.1} parent=31 // pred_fallthru
          _
      $region32: #{tpu_custom_call.1} parent=5 // pred_fallthru
        _
      %p309 = scmp.le.s32.totalorder 2, %s12
      // Predicated region
      $region37: #{tpu_custom_call.1} parent=5 // pred_check
        %p310 = pneg %p309
      $region38: #{tpu_custom_call.1} parent=5 // pred_check_branch
        %312 = sbr.rel (%p310) target = $region40
      $region39: #{tpu_custom_call.1} parent=5 // pred_region
        %s313 = ssub.s32 %s12, 2
        // Predicated region
        $region41: #{tpu_custom_call.1} parent=39 // pred_check
          %p314 = pneg %p109
        $region42: #{tpu_custom_call.1} parent=39 // pred_check_branch
          %316 = sbr.rel (%p314) target = $region44
        $region43: #{tpu_custom_call.1} parent=39 // pred_region
          %s317 = sand.u32 %s94, 1
          %s318 = scalar_lea.sflag [#allocation3], %s317
          %s319 = sand.u32 %s94, 1
          %s320 = smul.addr %s319, 16
          %s321 = scalar_lea.vmem [#allocation2], %s320
          %323 = dma.done %s318, 256
        $region44: #{tpu_custom_call.1} parent=39 // pred_fallthru
          _
      $region40: #{tpu_custom_call.1} parent=5 // pred_fallthru
        _
    $region6: #{tpu_custom_call.1} parent=1 // loop_footer
      %s16 = sadd.s32 1, %s12
    $region7: #{tpu_custom_call.1} parent=1 // loop_footer_branch
      %11 = sbr.rel target = $region3
    $region8: #{tpu_custom_call.1} parent=1 // loop_exit
      _
    %324 = vsyncpa [#allocation3], 1
    %s325 = scalar_lea.sflag [#allocation3], 1
    %326 = vsyncpa %s325, 1

// kernel: tpu_custom_call.1
$region0: #{tpu_custom_call.1}
  #allocation0 [shape = 'u32[]', space=smem, size = 0x4, offset = 0x4, fixed_abs, tag = 'smem constant byte address 0x4 - core index']
  #allocation1 [shape = 'u32[72,128]{1,0:T(1,128)}', space=vmem, size = 0x9000, scoped, tag = 'internal scratch']
  %s0 = inlined_call_operand.vmem [shape: bf16[32,64], index: 0, kind: input, shape index: {}]
  %s1 = inlined_call_operand.vmem [shape: bf16[64,32], index: 1, kind: input, shape index: {}]
  %s2 = inlined_call_operand.vmem [shape: f32[3,32], index: 2, kind: input, shape index: {}]
  %s3 = inlined_call_operand.hbm [shape: f32[32,32], index: 3, kind: output, shape index: {}]
  %s4 = sld [smem:[#allocation0]]
  $region45: #{tpu_custom_call.1} parent=0
    _
  %s6 = ssub.s32 1, %s4
  %s7 = scalar_select 0, %s6, %s4
  $region1: #{tpu_custom_call.1} parent=0
    #allocation2 [shape = 'u8[16384]{0}', space=vmem, size = 0x4000, scoped, tag = 'output window, operand 0']
    #allocation3 [shape = 's32[2]{0}', space=sflag, size = 0x8, scoped, tag = 'scoped memory for tpu_custom_call.1']
    %8 = vsyncpa [#allocation3], 0
    %s9 = scalar_lea.sflag [#allocation3], 1
    %10 = vsyncpa %s9, 0
    loop: start=0, step=1, limit=4
    $region2: #{tpu_custom_call.1} parent=1 // loop_pre_header
      _
    $region3: #{tpu_custom_call.1} parent=1 // loop_header
      %s12 = sphi 0, %s16
      %p13 = scmp.ge.s32.totalorder %s12, 4
      %s22 = sphi 0, %s24
      %s25 = sphi 0, %s22
      %s26 = sphi 0, %s25
      %s42 = sphi 0, %s26
      %s46 = sphi 0, %s46
      %s48 = sphi 0, %s46
      %s49 = sphi 0, %s48
      %s63 = sphi 0, %s49
      %s67 = sphi 0, %s67
      %s69 = sphi 0, %s67
      %s70 = sphi 0, %s69
      %s84 = sphi 0, %s70
      %s90 = sphi 0, %s92
      %s93 = sphi 0, %s90
      %s94 = sphi 0, %s93
      %s110 = sphi 0, %s94
    $region4: #{tpu_custom_call.1} parent=1 // loop_header_branch
      %15 = sbr.rel (%p13) target = $region8
    $region5: #{tpu_custom_call.1} parent=1 // loop_body
      %s17 = ssub.s32 %s12, 1
      %s18 = ssub.s32 %s12, 2
      %s19 = sadd.s32 %s12, 1
      %s20 = ssub.s32 %s12, %s19
      %p21 = scmp.eq.s32.totalorder %s20, 0
      %s23 = sadd.s32 %s22, 1
      %s24 = scalar_select %p21, %s22, %s23
      %p27 = pneg %p21
      %p28 = scmp.eq.s32.totalorder %s12, 1
      %p29 = por %p27, %p28
      %p30 = scmp.ne.s32.totalorder %s22, %s25
      %p31 = scmp.eq.s32.totalorder %s12, 0
      %p32 = por %p30, %p31
      %p33 = scmp.ne.s32.totalorder %s22, %s25
      %p34 = scmp.eq.s32.totalorder %s17, 1
      %p35 = por %p33, %p34
      %p36 = scmp.ne.s32.totalorder %s25, %s26
      %p37 = scmp.eq.s32.totalorder %s17, 0
      %p38 = por %p36, %p37
      %p39 = scmp.ne.s32.totalorder %s25, %s26
      %p40 = scmp.eq.s32.totalorder %s18, 1
      %p41 = por %p39, %p40
      %p43 = scmp.ne.s32.totalorder %s26, %s42
      %p44 = scmp.eq.s32.totalorder %s18, 0
      %p45 = por %p43, %p44
      %s47 = sadd.s32 %s46, 1
      %p50 = scmp.eq.s32.totalorder %s12, 1
      %p51 = scmp.ne.s32.totalorder %s46, %s48
      %p52 = scmp.eq.s32.totalorder %s12, 0
      %p53 = por %p51, %p52
      %p54 = scmp.ne.s32.totalorder %s46, %s48
      %p55 = scmp.eq.s32.totalorder %s17, 1
      %p56 = por %p54, %p55
      %p57 = scmp.ne.s32.totalorder %s48, %s49
      %p58 = scmp.eq.s32.totalorder %s17, 0
      %p59 = por %p57, %p58
      %p60 = scmp.ne.s32.totalorder %s48, %s49
      %p61 = scmp.eq.s32.totalorder %s18, 1
      %p62 = por %p60, %p61
      %p64 = scmp.ne.s32.totalorder %s49, %s63
      %p65 = scmp.eq.s32.totalorder %s18, 0
      %p66 = por %p64, %p65
      %s68 = sadd.s32 %s67, 1
      %p71 = scmp.eq.s32.totalorder %s12, 1
      %p72 = scmp.ne.s32.totalorder %s67, %s69
      %p73 = scmp.eq.s32.totalorder %s12, 0
      %p74 = por %p72, %p73
      %p75 = scmp.ne.s32.totalorder %s67, %s69
      %p76 = scmp.eq.s32.totalorder %s17, 1
      %p77 = por %p75, %p76
      %p78 = scmp.ne.s32.totalorder %s69, %s70
      %p79 = scmp.eq.s32.totalorder %s17, 0
      %p80 = por %p78, %p79
      %p81 = scmp.ne.s32.totalorder %s69, %s70
      %p82 = scmp.eq.s32.totalorder %s18, 1
      %p83 = por %p81, %p82
      %p85 = scmp.ne.s32.totalorder %s70, %s84
      %p86 = scmp.eq.s32.totalorder %s18, 0
      %p87 = por %p85, %p86
      %s88 = ssub.s32 %s12, %s19
      %p89 = scmp.eq.s32.totalorder %s88, 0
      %s91 = sadd.s32 %s90, 1
      %s92 = scalar_select %p89, %s90, %s91
      %p95 = pneg %p89
      %p96 = scmp.eq.s32.totalorder %s12, 1
      %p97 = por %p95, %p96
      %p98 = scmp.ne.s32.totalorder %s90, %s93
      %p99 = scmp.eq.s32.totalorder %s12, 0
      %p100 = por %p98, %p99
      %p101 = scmp.ne.s32.totalorder %s90, %s93
      %p102 = scmp.eq.s32.totalorder %s17, 1
      %p103 = por %p101, %p102
      %p104 = scmp.ne.s32.totalorder %s93, %s94
      %p105 = scmp.eq.s32.totalorder %s17, 0
      %p106 = por %p104, %p105
      %p107 = scmp.ne.s32.totalorder %s93, %s94
      %p108 = scmp.eq.s32.totalorder %s18, 1
      %p109 = por %p107, %p108
      %p111 = scmp.ne.s32.totalorder %s94, %s110
      %p112 = scmp.eq.s32.totalorder %s18, 0
      %p113 = por %p111, %p112
      %p114 = scmp.le.s32.totalorder 1, %s12
      %p115 = scmp.lt.s32.totalorder %s12, 3
      %p116 = pnand %p114, %p115
      %p117 = pneg %p116
      // Predicated region
      $region9: #{tpu_custom_call.1} parent=5 // pred_check
        _
      $region10: #{tpu_custom_call.1} parent=5 // pred_check_branch
        %119 = sbr.rel (%p116) target = $region12
      $region11: #{tpu_custom_call.1} parent=5 // pred_region
        %s120 = ssub.s32 %s12, 1
        // Predicated region
        $region13: #{tpu_custom_call.1} parent=11 // pred_check
          %p121 = pneg %p59
        $region14: #{tpu_custom_call.1} parent=11 // pred_check_branch
          %123 = sbr.rel (%p121) target = $region16
        $region15: #{tpu_custom_call.1} parent=11 // pred_region
          _
        $region16: #{tpu_custom_call.1} parent=11 // pred_fallthru
          _
        // Predicated region
        $region17: #{tpu_custom_call.1} parent=11 // pred_check
          %p124 = pneg %p80
        $region18: #{tpu_custom_call.1} parent=11 // pred_check_branch
          %126 = sbr.rel (%p124) target = $region20
        $region19: #{tpu_custom_call.1} parent=11 // pred_region
          _
        $region20: #{tpu_custom_call.1} parent=11 // pred_fallthru
          _
      $region12: #{tpu_custom_call.1} parent=5 // pred_fallthru
        _
      %p127 = scmp.lt.s32.totalorder %s12, 2
      // Predicated region
      $region21: #{tpu_custom_call.1} parent=5 // pred_check
        %p128 = pneg %p127
      $region22: #{tpu_custom_call.1} parent=5 // pred_check_branch
        %130 = sbr.rel (%p128) target = $region24
      $region23: #{tpu_custom_call.1} parent=5 // pred_region
        // Predicated region
        $region25: #{tpu_custom_call.1} parent=23 // pred_check
          %p131 = pneg %p32
        $region26: #{tpu_custom_call.1} parent=23 // pred_check_branch
          %133 = sbr.rel (%p131) target = $region28
        $region27: #{tpu_custom_call.1} parent=23 // pred_region
          %s134 = smul.u32 2, %s12
          %p135 = scmp.lt.s32.totalorder %s134, 3
          %s136 = scalar_select %p135, %s134, 3
          %s137 = smul.addr %s136, 4
          %s138 = scalar_lea.vmem %s0, %s137
          %s139 = smul.u32 2, %s12
        $region28: #{tpu_custom_call.1} parent=23 // pred_fallthru
          _
      $region24: #{tpu_custom_call.1} parent=5 // pred_fallthru
        _
      %p140 = scmp.le.s32.totalorder 1, %s12
      %p141 = scmp.lt.s32.totalorder %s12, 3
      %p142 = pnand %p140, %p141
      %p143 = pneg %p142
      // Predicated region
      $region29: #{tpu_custom_call.1} parent=5 // pred_check
        _
      $region30: #{tpu_custom_call.1} parent=5 // pred_check_branch
        %145 = sbr.rel (%p142) target = $region32
      $region31: #{tpu_custom_call.1} parent=5 // pred_region
        %s146 = ssub.s32 %s12, 1
        %s147 = smul.u32 2, %s17
        %p148 = scmp.lt.s32.totalorder %s147, 3
        %s149 = scalar_select %p148, %s147, 3
        %s150 = smul.addr %s149, 4
        %s151 = scalar_lea.vmem %s0, %s150
        %p152 = pneg %p38
        %p153 = pneg %p35
        %p154 = pneg %p59
        %p155 = pneg %p56
        %p156 = pneg %p80
        %p157 = pneg %p77
        %p158 = pneg %p106
        %p159 = pneg %p103
        %s160 = sand.u32 %s93, 1
        %s161 = scalar_lea.sflag [#allocation3], %s160
        %s162 = sand.u32 %s93, 1
        %s163 = smul.addr %s162, 16
        %s164 = scalar_lea.vmem [#allocation2], %s163
        %s165 = smul.u32 2, %s17
        %p166 = scmp.lt.s32.totalorder %s165, 3
        %s167 = scalar_select %p166, %s165, 3
        %s168 = smul.addr %s167, 4
        %s169 = scalar_lea.vmem %s0, %s168
        %s170 = smul.u32 2, %s17
        %s171 = smul.u32 2, %s17
        %v173 = vld [vmem:[%s169] sm:$0xf]
        %v174 = vld [vmem:[%s169 + $0x4] sm:$0xf]
        %v175 = vld [vmem:[%s1] sm:$0xf]
        %v176 = vld [vmem:[%s1 + $0x4] sm:$0xf]
        %v177 = vld [vmem:[%s1 + $0x8] sm:$0xf]
        %v178 = vld [vmem:[%s1 + $0xc] sm:$0xf]
        %v179 = vld [vmem:[%s1 + $0x10] sm:$0xf]
        %v180 = vld [vmem:[%s1 + $0x14] sm:$0xf]
        %v181 = vld [vmem:[%s1 + $0x18] sm:$0xf]
        %v182 = vld [vmem:[%s1 + $0x1c] sm:$0xf]
        %v183 = vld [vmem:[%s2] sm:$0x1]
        %v184 = vperm.slane %v183, 0
        %v187 = vunpack.c.l.b16 %v173
        %v188 = vunpack.c.l.b16 %v174
        %v189 = vpack.c.b16 %v188, %v187
        %v198 = vunpack.c.l.b16 %v175
        %v199 = vunpack.c.l.b16 %v176
        %v200 = vunpack.c.l.b16 %v177
        %v201 = vunpack.c.l.b16 %v178
        %v202 = vunpack.c.l.b16 %v179
        %v203 = vunpack.c.l.b16 %v180
        %v204 = vunpack.c.l.b16 %v181
        %v205 = vunpack.c.l.b16 %v182
        %v206 = vpack.c.b16 %v199, %v198
        %v207 = vpack.c.b16 %v201, %v200
        %v208 = vpack.c.b16 %v203, %v202
        %v209 = vpack.c.b16 %v205, %v204
        %vm214 = vcmask 523264
        %v216 = vsel %vm214, %v189, 0
        %218 = vmatpush.bf16.msra.mxu0 0
        %219 = vmatpush.bf16.msra.mxu0 0
        %220 = vmatpush.bf16.msra.mxu0 0
        %221 = vmatpush.bf16.msra.mxu0 0
        %222 = vmatpush.bf16.msra.mxu0 %v209
        %223 = vmatpush.bf16.msra.mxu0 %v208
        %224 = vmatpush.bf16.msra.mxu0 %v207
        %225 = vmatpush.bf16.msra.mxu0 %v206
        %226 = vmatmul.bf16.gmra.mxu0 %v216
        %v227 = vpop.f32.mrf.mxu0
        %v228 = vadd.f32 %v184, %v227
        %v229 = vpop.f32.mrf.mxu0
        %v230 = vadd.f32 %v184, %v229
        %231 = vdwg.mxu0
        %vm232 = vcmask 261120
        %v233 = vsel %vm232, %v228, 0.0
        %234 = vadd.xlane.f32.xlu0 %v233
        %v235 = vpop.xlane.xlu0 %234
        %v236 = vsel %vm232, %v230, 0.0
        %237 = vadd.xlane.f32.xlu0 %v236
        %v238 = vpop.xlane.xlu0 %237
        %v239 = vmul.f32 %v235, 0.03125
        %v240 = vmul.f32 %v238, 0.03125
        %v241 = vsub.f32 %v228, %v239
        %v242 = vsub.f32 %v230, %v240
        %v243 = vmul.f32 %v241, %v241
        %v244 = vmul.f32 %v242, %v242
        %v245 = vsel %vm232, %v243, 0.0
        %246 = vadd.xlane.f32.xlu0 %v245
        %v247 = vpop.xlane.xlu0 %246
        %v248 = vsel %vm232, %v244, 0.0
        %249 = vadd.xlane.f32.xlu0 %v248
        %v250 = vpop.xlane.xlu0 %249
        %v251 = vmul.f32 %v247, 0.03125
        %v252 = vmul.f32 %v250, 0.03125
        %v253 = vadd.f32 %v251, 1e-05
        %v254 = vadd.f32 %v252, 1e-05
        %v255 = vrsqrt.pop %v253
        %v256 = vmul.f32 %v255, %v253
        %v257 = vmul.f32 %v256, %v255
        %v258 = vmul.f32 0.5, %v257
        %v259 = vsub.f32 1.5, %v258
        %v260 = vmul.f32 %v255, %v259
        %vm261 = vweird.f32 %v253
        %vm262 = vweird.f32 %v255
        %vm263 = vmor %vm261, %vm262
        %v264 = vsel %vm263, %v255, %v260
        %v265 = vrsqrt.pop %v254
        %v266 = vmul.f32 %v265, %v254
        %v267 = vmul.f32 %v266, %v265
        %v268 = vmul.f32 0.5, %v267
        %v269 = vsub.f32 1.5, %v268
        %v270 = vmul.f32 %v265, %v269
        %vm271 = vweird.f32 %v254
        %vm272 = vweird.f32 %v265
        %vm273 = vmor %vm271, %vm272
        %v274 = vsel %vm273, %v265, %v270
        %v275 = vmul.f32 %v241, %v264
        %v276 = vmul.f32 %v242, %v274
        %v277 = vld [vmem:[%s2 + $0x1] sm:$0x1]
        %v278 = vperm.slane %v277, 0
        %v279 = vmul.f32 %v275, %v278
        %v280 = vmul.f32 %v276, %v278
        %v281 = vld [vmem:[%s2 + $0x2] sm:$0x1]
        %v282 = vperm.slane %v281, 0
        %v283 = vadd.f32 %v279, %v282
        %v284 = vadd.f32 %v280, %v282
        %285 = vst.msk [vmem:[%s164] sm:$0xff] %vm232, %v283
        %286 = vst.msk [vmem:[%s164 + $0x8] sm:$0xff] %vm232, %v284
        %s287 = sand.u32 %s93, 1
        %s288 = scalar_lea.sflag [#allocation3], %s287
        %s289 = sand.u32 %s93, 1
        %s290 = smul.addr %s289, 16
        %s291 = scalar_lea.vmem [#allocation2], %s290
        // Predicated region
        $region33: #{tpu_custom_call.1} parent=31 // pred_check
          %p292 = pneg %p103
        $region34: #{tpu_custom_call.1} parent=31 // pred_check_branch
          %294 = sbr.rel (%p292) target = $region36
        $region35: #{tpu_custom_call.1} parent=31 // pred_region
          %s295 = smul.u32 2, %s17
          %297 = vsyncadd %s288, 0
          %s298 = smul.addr %s295, 8
          %s299 = scalar_lea.hbm %s3, %s298
          %s300 = sshll.u32 %s291, 4
          %s301 = int_to_ptr.vmem [resolvable:$true] %s300
          %s302 = sshll.u32 %s299, 4
          %s303 = int_to_ptr.hbm [resolvable:$true] %s302
          %308 = dma.vmem_to_hbm [thread:$0]  %s301, 256, %s303, %s288, 128, 128, 8
        $region36: #{tpu_custom_call.1} parent=31 // pred_fallthru
          _
      $region32: #{tpu_custom_call.1} parent=5 // pred_fallthru
        _
      %p309 = scmp.le.s32.totalorder 2, %s12
      // Predicated region
      $region37: #{tpu_custom_call.1} parent=5 // pred_check
        %p310 = pneg %p309
      $region38: #{tpu_custom_call.1} parent=5 // pred_check_branch
        %312 = sbr.rel (%p310) target = $region40
      $region39: #{tpu_custom_call.1} parent=5 // pred_region
        %s313 = ssub.s32 %s12, 2
        // Predicated region
        $region41: #{tpu_custom_call.1} parent=39 // pred_check
          %p314 = pneg %p109
        $region42: #{tpu_custom_call.1} parent=39 // pred_check_branch
          %316 = sbr.rel (%p314) target = $region44
        $region43: #{tpu_custom_call.1} parent=39 // pred_region
          %s317 = sand.u32 %s94, 1
          %s318 = scalar_lea.sflag [#allocation3], %s317
          %s319 = sand.u32 %s94, 1
          %s320 = smul.addr %s319, 16
          %s321 = scalar_lea.vmem [#allocation2], %s320
          %323 = dma.done %s318, 256
        $region44: #{tpu_custom_call.1} parent=39 // pred_fallthru
          _
      $region40: #{tpu_custom_call.1} parent=5 // pred_fallthru
        _
    $region6: #{tpu_custom_call.1} parent=1 // loop_footer
      %s16 = sadd.s32 1, %s12
    $region7: #{tpu_custom_call.1} parent=1 // loop_footer_branch
      %11 = sbr.rel target = $region3
    $region8: #{tpu_custom_call.1} parent=1 // loop_exit
      _
    %324 = vsyncpa [#allocation3], 1
    %s325 = scalar_lea.sflag [#allocation3], 1
    %326 = vsyncpa %s325, 1

</llo_original>
